<compile_context>
chip_gen: v5e
topology: v5e:2x2
jax: 0.10.0
libtpu: 0.0.40
codegen_flags: <defaults>
</compile_context>

<pallas_src>
import math

import jax
import jax.numpy as jnp
from jax.experimental import pallas as pl
from jax.experimental.pallas import tpu as pltpu


# ----------------------------------------------------------------------------
# Kernel: one (block_m, D) tile of tokens through the whole FFN.
# ----------------------------------------------------------------------------
def _ffn_kernel(x_ref, w1_ref, b1_ref, w2_ref, b2_ref, o_ref):
    x = x_ref[...]

    # Linear 1 (MXU, f32 accumulate), bias in f32.
    h = jnp.dot(x.astype(w1_ref.dtype), w1_ref[...],
                preferred_element_type=jnp.float32)
    h = h + b1_ref[...].astype(jnp.float32)

    # TODO(synk): PyTorch nn.GELU() defaults to exact erf; tanh approximation is
    # used for guaranteed Mosaic lowering (max abs diff ~3e-4).
    h = jax.nn.gelu(h, approximate=True)

    # Linear 2 (MXU, f32 accumulate), bias in f32.
    y = jnp.dot(h.astype(w2_ref.dtype), w2_ref[...],
                preferred_element_type=jnp.float32)
    y = y + b2_ref[...].astype(jnp.float32)

    # TODO(synk): nn.Dropout layers are identity here (p=0.0 / inference path).
    o_ref[...] = y.astype(o_ref.dtype)


# ----------------------------------------------------------------------------
# Wrapper: flatten leading dims to M, tile M, keep weights resident in VMEM.
# ----------------------------------------------------------------------------
def _round_up(v, m):
    return (v + m - 1) // m * m


def feed_forward(x, w1, b1, w2, b2, *, block_m=128):
    """y = GELU(x @ w1 + b1) @ w2 + b2 over the last axis of x."""
    orig_shape = x.shape
    D = x.shape[-1]
    H = w1.shape[1]
    assert w1.shape == (D, H) and w2.shape == (H, D)

    M = math.prod(orig_shape[:-1]) if len(orig_shape) > 1 else 1
    x2 = x.reshape(M, D)

    # Tile size along M: multiple of 8 (sublane group), capped by block_m.
    tm = min(block_m, _round_up(M, 8))
    m_pad = _round_up(M, tm)
    if m_pad != M:
        x2 = jnp.pad(x2, ((0, m_pad - M), (0, 0)))
    grid = (m_pad // tm,)

    b1_2d = b1.reshape(1, H)
    b2_2d = b2.reshape(1, D)

    bytes_accessed = int(x2.size * x2.dtype.itemsize
                         + w1.size * w1.dtype.itemsize
                         + b1.size * b1.dtype.itemsize
                         + w2.size * w2.dtype.itemsize
                         + b2.size * b2.dtype.itemsize
                         + m_pad * D * x.dtype.itemsize)
    cost = pl.CostEstimate(
        flops=int(4 * m_pad * D * H),          # two matmuls
        transcendentals=int(m_pad * H),        # GELU
        bytes_accessed=bytes_accessed,
    )

    out = pl.pallas_call(
        _ffn_kernel,
        out_shape=jax.ShapeDtypeStruct((m_pad, D), x.dtype),
        grid=grid,
        in_specs=[
            pl.BlockSpec((tm, D), lambda i: (i, 0)),   # x tile
            pl.BlockSpec((D, H), lambda i: (0, 0)),    # W1 (grid-invariant)
            pl.BlockSpec((1, H), lambda i: (0, 0)),    # b1
            pl.BlockSpec((H, D), lambda i: (0, 0)),    # W2 (grid-invariant)
            pl.BlockSpec((1, D), lambda i: (0, 0)),    # b2
        ],
        out_specs=pl.BlockSpec((tm, D), lambda i: (i, 0)),
        compiler_params=pltpu.CompilerParams(
            dimension_semantics=("parallel",),
            vmem_limit_bytes=32 * 1024 * 1024,
        ),
        cost_estimate=cost,
    )(x2, w1, b1_2d, w2, b2_2d)

    if m_pad != M:
        out = out[:M]
    return out.reshape(orig_shape)


# ----------------------------------------------------------------------------
# Demo / correctness check.
# ----------------------------------------------------------------------------
if __name__ == "__main__":
    # Small but lane/sublane-dense shapes: M = B*N = 256 rows, D = 128 lanes.
    B, N, DIM, HIDDEN = 2, 128, 128, 256

    key = jax.random.PRNGKey(0)
    kx, k1, k2, k3, k4 = jax.random.split(key, 5)
    x = jax.random.normal(kx, (B, N, DIM), jnp.float32)
    w1 = 0.05 * jax.random.normal(k1, (DIM, HIDDEN), jnp.float32)
    b1 = 0.05 * jax.random.normal(k2, (HIDDEN,), jnp.float32)
    w2 = 0.05 * jax.random.normal(k3, (HIDDEN, DIM), jnp.float32)
    b2 = 0.05 * jax.random.normal(k4, (DIM,), jnp.float32)

    out = feed_forward(x, w1, b1, w2, b2)
    out = jax.block_until_ready(out)

    # Pure-JAX reference (same GELU approximation).
    ref = jnp.dot(x, w1, precision=jax.lax.Precision.HIGHEST) + b1
    ref = jax.nn.gelu(ref, approximate=True)
    ref = jnp.dot(ref, w2, precision=jax.lax.Precision.HIGHEST) + b2

    assert out.shape == (B, N, DIM), out.shape
    assert jnp.allclose(out, ref, atol=1e-2, rtol=1e-2), float(
        jnp.max(jnp.abs(out - ref)))
    print("KERNEL_OK")
</pallas_src>

<mosaic_0001>
module attributes {stable_mosaic.version = 11 : i64} {
  func.func @_ffn_kernel(%arg0: i32, %arg1: memref<128x128xf32, #tpu.memory_space<vmem>>, %arg2: memref<128x256xf32, #tpu.memory_space<vmem>>, %arg3: memref<1x256xf32, #tpu.memory_space<vmem>>, %arg4: memref<256x128xf32, #tpu.memory_space<vmem>>, %arg5: memref<1x128xf32, #tpu.memory_space<vmem>>, %arg6: memref<128x128xf32, #tpu.memory_space<vmem>>) attributes {dimension_semantics = [#tpu.dimension_semantics<parallel>], iteration_bounds = array<i64: 2>, scalar_prefetch = 0 : i64, scratch_operands = 0 : i64, tpu.core_type = #tpu.core_type<tc>, window_params = [{transform_indices = @transform_0, window_bounds = array<i64: 128, 128>}, {pipeline_mode = #tpu.pipeline_mode<synchronous>, transform_indices = @transform_1, window_bounds = array<i64: 128, 256>}, {pipeline_mode = #tpu.pipeline_mode<synchronous>, transform_indices = @transform_2, window_bounds = array<i64: 1, 256>}, {pipeline_mode = #tpu.pipeline_mode<synchronous>, transform_indices = @transform_3, window_bounds = array<i64: 256, 128>}, {pipeline_mode = #tpu.pipeline_mode<synchronous>, transform_indices = @transform_4, window_bounds = array<i64: 1, 128>}, {transform_indices = @transform_5, window_bounds = array<i64: 128, 128>}]} {
    %c0 = arith.constant 0 : index
    %c0_0 = arith.constant 0 : index
    %0 = vector.load %arg1[%c0, %c0_0] : memref<128x128xf32, #tpu.memory_space<vmem>>, vector<128x128xf32>
    %c0_1 = arith.constant 0 : index
    %c0_2 = arith.constant 0 : index
    %1 = vector.load %arg2[%c0_1, %c0_2] : memref<128x256xf32, #tpu.memory_space<vmem>>, vector<128x256xf32>
    %cst = arith.constant dense<0.000000e+00> : vector<128x256xf32>
    %2 = tpu.matmul %0, %1, %cst {dimension_numbers = #tpu.dot_dimension_numbers<[1], [0], [0], [1], [0, 0, 1, 1], [], []>} : vector<128x128xf32>, vector<128x256xf32>, vector<128x256xf32> -> vector<128x256xf32>
    %c0_3 = arith.constant 0 : index
    %c0_4 = arith.constant 0 : index
    %3 = vector.load %arg3[%c0_3, %c0_4] : memref<1x256xf32, #tpu.memory_space<vmem>>, vector<1x256xf32>
    %4 = vector.broadcast %3 : vector<1x256xf32> to vector<128x256xf32>
    %5 = arith.addf %2, %4 : vector<128x256xf32>
    %6 = arith.mulf %5, %5 : vector<128x256xf32>
    %7 = arith.mulf %5, %6 : vector<128x256xf32>
    %cst_5 = arith.constant 4.471500e-02 : f32
    %8 = vector.broadcast %cst_5 : f32 to vector<128x256xf32>
    %9 = arith.mulf %8, %7 : vector<128x256xf32>
    %10 = arith.addf %5, %9 : vector<128x256xf32>
    %cst_6 = arith.constant 0.797884583 : f32
    %11 = vector.broadcast %cst_6 : f32 to vector<128x256xf32>
    %12 = arith.mulf %11, %10 : vector<128x256xf32>
    %13 = math.tanh %12 : vector<128x256xf32>
    %cst_7 = arith.constant 1.000000e+00 : f32
    %14 = vector.broadcast %cst_7 : f32 to vector<128x256xf32>
    %15 = arith.addf %14, %13 : vector<128x256xf32>
    %cst_8 = arith.constant 5.000000e-01 : f32
    %16 = vector.broadcast %cst_8 : f32 to vector<128x256xf32>
    %17 = arith.mulf %16, %15 : vector<128x256xf32>
    %18 = arith.mulf %5, %17 : vector<128x256xf32>
    %c0_9 = arith.constant 0 : index
    %c0_10 = arith.constant 0 : index
    %19 = vector.load %arg4[%c0_9, %c0_10] : memref<256x128xf32, #tpu.memory_space<vmem>>, vector<256x128xf32>
    %cst_11 = arith.constant dense<0.000000e+00> : vector<128x128xf32>
    %20 = tpu.matmul %18, %19, %cst_11 {dimension_numbers = #tpu.dot_dimension_numbers<[1], [0], [0], [1], [0, 0, 1, 1], [], []>} : vector<128x256xf32>, vector<256x128xf32>, vector<128x128xf32> -> vector<128x128xf32>
    %c0_12 = arith.constant 0 : index
    %c0_13 = arith.constant 0 : index
    %21 = vector.load %arg5[%c0_12, %c0_13] : memref<1x128xf32, #tpu.memory_space<vmem>>, vector<1x128xf32>
    %22 = vector.broadcast %21 : vector<1x128xf32> to vector<128x128xf32>
    %23 = arith.addf %20, %22 : vector<128x128xf32>
    %c0_14 = arith.constant 0 : index
    %c0_15 = arith.constant 0 : index
    %24 = vector.load %arg6[%c0_14, %c0_15] : memref<128x128xf32, #tpu.memory_space<vmem>>, vector<128x128xf32>
    tpu.vector_store %arg6[%c0_14, %c0_15], %23 {strides = array<i32>} : memref<128x128xf32, #tpu.memory_space<vmem>>, vector<128x128xf32>,
    return
  }
  func.func @transform_0(%arg0: i32) -> (i32, i32) {
    %c0_i32 = arith.constant 0 : i32
    %c0_i32_0 = arith.constant 0 : i32
    return %arg0, %c0_i32 : i32, i32
  }
  func.func @transform_1(%arg0: i32) -> (i32, i32) {
    %c0_i32 = arith.constant 0 : i32
    %c0_i32_0 = arith.constant 0 : i32
    %c0_i32_1 = arith.constant 0 : i32
    return %c0_i32, %c0_i32_0 : i32, i32
  }
  func.func @transform_2(%arg0: i32) -> (i32, i32) {
    %c0_i32 = arith.constant 0 : i32
    %c0_i32_0 = arith.constant 0 : i32
    %c0_i32_1 = arith.constant 0 : i32
    return %c0_i32, %c0_i32_0 : i32, i32
  }
  func.func @transform_3(%arg0: i32) -> (i32, i32) {
    %c0_i32 = arith.constant 0 : i32
    %c0_i32_0 = arith.constant 0 : i32
    %c0_i32_1 = arith.constant 0 : i32
    return %c0_i32, %c0_i32_0 : i32, i32
  }
  func.func @transform_4(%arg0: i32) -> (i32, i32) {
    %c0_i32 = arith.constant 0 : i32
    %c0_i32_0 = arith.constant 0 : i32
    %c0_i32_1 = arith.constant 0 : i32
    return %c0_i32, %c0_i32_0 : i32, i32
  }
  func.func @transform_5(%arg0: i32) -> (i32, i32) {
    %c0_i32 = arith.constant 0 : i32
    %c0_i32_0 = arith.constant 0 : i32
    return %arg0, %c0_i32 : i32, i32
  }
}

</mosaic_0001>

<llo_original>
// kernel: tpu_custom_call.1
$region0: #{tpu_custom_call.1}
  #allocation0 [shape = 'u32[]', space=smem, size = 0x4, offset = 0x4, fixed_abs, tag = 'smem constant byte address 0x4 - core index']
  #allocation1 [shape = 'u32[72,128]{1,0:T(1,128)}', space=vmem, size = 0x9000, scoped, tag = 'internal scratch']
  %s0 = inlined_call_operand.hbm [shape: f32[256,128], index: 0, kind: input, shape index: {}]
  %s1 = inlined_call_operand.hbm [shape: f32[128,256], index: 1, kind: input, shape index: {}]
  %s2 = inlined_call_operand.hbm [shape: f32[1,256], index: 2, kind: input, shape index: {}]
  %s3 = inlined_call_operand.hbm [shape: f32[256,128], index: 3, kind: input, shape index: {}]
  %s4 = inlined_call_operand.vmem [shape: f32[1,128], index: 4, kind: input, shape index: {}]
  %s5 = inlined_call_operand.hbm [shape: f32[256,128], index: 5, kind: output, shape index: {}]
  %s6 = sld [smem:[#allocation0]]
  $region69: #{tpu_custom_call.1} parent=0
    _
  %s8 = ssub.s32 1, %s6
  %s9 = scalar_select 0, %s8, %s6
  $region1: #{tpu_custom_call.1} parent=0
    #allocation2 [shape = 'u8[131072]{0}', space=vmem, size = 0x20000, scoped, tag = 'input window, operand 0']
    #allocation3 [shape = 's32[2]{0}', space=sflag, size = 0x8, scoped, tag = 'scoped memory for tpu_custom_call.1']
    #allocation4 [shape = 's32[2]{0}', space=sflag, size = 0x8, scoped, tag = 'scoped memory for tpu_custom_call.1']
    #allocation5 [shape = 'u8[131072]{0}', space=vmem, size = 0x20000, scoped, tag = 'input window, operand 1, single buffered']
    #allocation6 [shape = 's32[1]{0}', space=sflag, size = 0x4, scoped, tag = 'scoped memory for tpu_custom_call.1']
    #allocation7 [shape = 'u8[1024]{0}', space=vmem, size = 0x400, scoped, tag = 'input window, operand 2, single buffered']
    #allocation8 [shape = 'u8[131072]{0}', space=vmem, size = 0x20000, scoped, tag = 'input window, operand 3, single buffered']
    #allocation9 [shape = 's32[1]{0}', space=sflag, size = 0x4, scoped, tag = 'scoped memory for tpu_custom_call.1']
    #allocation10 [shape = 'u8[131072]{0}', space=vmem, size = 0x20000, scoped, tag = 'output window, operand 0']
    %10 = vsyncpa [#allocation3], 0
    %s11 = scalar_lea.sflag [#allocation3], 1
    %12 = vsyncpa %s11, 0
    %13 = vsyncpa [#allocation6], 0
    %14 = vsyncpa [#allocation9], 0
    %15 = vsyncpa [#allocation4], 0
    %s16 = scalar_lea.sflag [#allocation4], 1
    %17 = vsyncpa %s16, 0
    loop: start=0, step=1, limit=4
    $region2: #{tpu_custom_call.1} parent=1 // loop_pre_header
      _
    $region3: #{tpu_custom_call.1} parent=1 // loop_header
      %s19 = sphi 0, %s23
      %p20 = scmp.ge.s32.totalorder %s19, 4
      %s29 = sphi 0, %s31
      %s32 = sphi 0, %s29
      %s33 = sphi 0, %s32
      %s49 = sphi 0, %s33
      %s53 = sphi 0, %s53
      %s55 = sphi 0, %s53
      %s56 = sphi 0, %s55
      %s70 = sphi 0, %s56
      %s74 = sphi 0, %s74
      %s76 = sphi 0, %s74
      %s77 = sphi 0, %s76
      %s91 = sphi 0, %s77
      %s95 = sphi 0, %s95
      %s97 = sphi 0, %s95
      %s98 = sphi 0, %s97
      %s112 = sphi 0, %s98
      %s116 = sphi 0, %s116
      %s118 = sphi 0, %s116
      %s119 = sphi 0, %s118
      %s133 = sphi 0, %s119
      %s139 = sphi 0, %s141
      %s142 = sphi 0, %s139
      %s143 = sphi 0, %s142
      %s159 = sphi 0, %s143
    $region4: #{tpu_custom_call.1} parent=1 // loop_header_branch
      %22 = sbr.rel (%p20) target = $region8
    $region5: #{tpu_custom_call.1} parent=1 // loop_body
      %s24 = ssub.s32 %s19, 1
      %s25 = ssub.s32 %s19, 2
      %s26 = sadd.s32 %s19, 1
      %s27 = ssub.s32 %s19, %s26
      %p28 = scmp.eq.s32.totalorder %s27, 0
      %s30 = sadd.s32 %s29, 1
      %s31 = scalar_select %p28, %s29, %s30
      %p34 = pneg %p28
      %p35 = scmp.eq.s32.totalorder %s19, 1
      %p36 = por %p34, %p35
      %p37 = scmp.ne.s32.totalorder %s29, %s32
      %p38 = scmp.eq.s32.totalorder %s19, 0
      %p39 = por %p37, %p38
      %p40 = scmp.ne.s32.totalorder %s29, %s32
      %p41 = scmp.eq.s32.totalorder %s24, 1
      %p42 = por %p40, %p41
      %p43 = scmp.ne.s32.totalorder %s32, %s33
      %p44 = scmp.eq.s32.totalorder %s24, 0
      %p45 = por %p43, %p44
      %p46 = scmp.ne.s32.totalorder %s32, %s33
      %p47 = scmp.eq.s32.totalorder %s25, 1
      %p48 = por %p46, %p47
      %p50 = scmp.ne.s32.totalorder %s33, %s49
      %p51 = scmp.eq.s32.totalorder %s25, 0
      %p52 = por %p50, %p51
      %s54 = sadd.s32 %s53, 1
      %p57 = scmp.eq.s32.totalorder %s19, 1
      %p58 = scmp.ne.s32.totalorder %s53, %s55
      %p59 = scmp.eq.s32.totalorder %s19, 0
      %p60 = por %p58, %p59
      %p61 = scmp.ne.s32.totalorder %s53, %s55
      %p62 = scmp.eq.s32.totalorder %s24, 1
      %p63 = por %p61, %p62
      %p64 = scmp.ne.s32.totalorder %s55, %s56
      %p65 = scmp.eq.s32.totalorder %s24, 0
      %p66 = por %p64, %p65
      %p67 = scmp.ne.s32.totalorder %s55, %s56
      %p68 = scmp.eq.s32.totalorder %s25, 1
      %p69 = por %p67, %p68
      %p71 = scmp.ne.s32.totalorder %s56, %s70
      %p72 = scmp.eq.s32.totalorder %s25, 0
      %p73 = por %p71, %p72
      %s75 = sadd.s32 %s74, 1
      %p78 = scmp.eq.s32.totalorder %s19, 1
      %p79 = scmp.ne.s32.totalorder %s74, %s76
      %p80 = scmp.eq.s32.totalorder %s19, 0
      %p81 = por %p79, %p80
      %p82 = scmp.ne.s32.totalorder %s74, %s76
      %p83 = scmp.eq.s32.totalorder %s24, 1
      %p84 = por %p82, %p83
      %p85 = scmp.ne.s32.totalorder %s76, %s77
      %p86 = scmp.eq.s32.totalorder %s24, 0
      %p87 = por %p85, %p86
      %p88 = scmp.ne.s32.totalorder %s76, %s77
      %p89 = scmp.eq.s32.totalorder %s25, 1
      %p90 = por %p88, %p89
      %p92 = scmp.ne.s32.totalorder %s77, %s91
      %p93 = scmp.eq.s32.totalorder %s25, 0
      %p94 = por %p92, %p93
      %s96 = sadd.s32 %s95, 1
      %p99 = scmp.eq.s32.totalorder %s19, 1
      %p100 = scmp.ne.s32.totalorder %s95, %s97
      %p101 = scmp.eq.s32.totalorder %s19, 0
      %p102 = por %p100, %p101
      %p103 = scmp.ne.s32.totalorder %s95, %s97
      %p104 = scmp.eq.s32.totalorder %s24, 1
      %p105 = por %p103, %p104
      %p106 = scmp.ne.s32.totalorder %s97, %s98
      %p107 = scmp.eq.s32.totalorder %s24, 0
      %p108 = por %p106, %p107
      %p109 = scmp.ne.s32.totalorder %s97, %s98
      %p110 = scmp.eq.s32.totalorder %s25, 1
      %p111 = por %p109, %p110
      %p113 = scmp.ne.s32.totalorder %s98, %s112
      %p114 = scmp.eq.s32.totalorder %s25, 0
      %p115 = por %p113, %p114
      %s117 = sadd.s32 %s116, 1
      %p120 = scmp.eq.s32.totalorder %s19, 1
      %p121 = scmp.ne.s32.totalorder %s116, %s118
      %p122 = scmp.eq.s32.totalorder %s19, 0
      %p123 = por %p121, %p122
      %p124 = scmp.ne.s32.totalorder %s116, %s118
      %p125 = scmp.eq.s32.totalorder %s24, 1
      %p126 = por %p124, %p125
      %p127 = scmp.ne.s32.totalorder %s118, %s119
      %p128 = scmp.eq.s32.totalorder %s24, 0
      %p129 = por %p127, %p128
      %p130 = scmp.ne.s32.totalorder %s118, %s119
      %p131 = scmp.eq.s32.totalorder %s25, 1
      %p132 = por %p130, %p131
      %p134 = scmp.ne.s32.totalorder %s119, %s133
      %p135 = scmp.eq.s32.totalorder %s25, 0
      %p136 = por %p134, %p135
      %s137 = ssub.s32 %s19, %s26
      %p138 = scmp.eq.s32.totalorder %s137, 0
      %s140 = sadd.s32 %s139, 1
      %s141 = scalar_select %p138, %s139, %s140
      %p144 = pneg %p138
      %p145 = scmp.eq.s32.totalorder %s19, 1
      %p146 = por %p144, %p145
      %p147 = scmp.ne.s32.totalorder %s139, %s142
      %p148 = scmp.eq.s32.totalorder %s19, 0
      %p149 = por %p147, %p148
      %p150 = scmp.ne.s32.totalorder %s139, %s142
      %p151 = scmp.eq.s32.totalorder %s24, 1
      %p152 = por %p150, %p151
      %p153 = scmp.ne.s32.totalorder %s142, %s143
      %p154 = scmp.eq.s32.totalorder %s24, 0
      %p155 = por %p153, %p154
      %p156 = scmp.ne.s32.totalorder %s142, %s143
      %p157 = scmp.eq.s32.totalorder %s25, 1
      %p158 = por %p156, %p157
      %p160 = scmp.ne.s32.totalorder %s143, %s159
      %p161 = scmp.eq.s32.totalorder %s25, 0
      %p162 = por %p160, %p161
      %p163 = scmp.le.s32.totalorder 1, %s19
      %p164 = scmp.lt.s32.totalorder %s19, 3
      %p165 = pnand %p163, %p164
      %p166 = pneg %p165
      // Predicated region
      $region9: #{tpu_custom_call.1} parent=5 // pred_check
        _
      $region10: #{tpu_custom_call.1} parent=5 // pred_check_branch
        %168 = sbr.rel (%p165) target = $region12
      $region11: #{tpu_custom_call.1} parent=5 // pred_region
        %s169 = ssub.s32 %s19, 1
        // Predicated region
        $region13: #{tpu_custom_call.1} parent=11 // pred_check
          %p170 = pneg %p66
        $region14: #{tpu_custom_call.1} parent=11 // pred_check_branch
          %172 = sbr.rel (%p170) target = $region16
        $region15: #{tpu_custom_call.1} parent=11 // pred_region
          %174 = vsyncadd [#allocation6], 0
          %s175 = sshll.u32 %s1, 4
          %s176 = int_to_ptr.hbm [resolvable:$true] %s175
          %s177 = sshll.u32 [#allocation5], 4
          %s178 = int_to_ptr.vmem [resolvable:$true] %s177
          %183 = dma.hbm_to_vmem [thread:$0]  %s176, 4096, %s178, [#allocation6], 256, 256, 16
        $region16: #{tpu_custom_call.1} parent=11 // pred_fallthru
          _
        // Predicated region
        $region17: #{tpu_custom_call.1} parent=11 // pred_check
          %p184 = pneg %p87
        $region18: #{tpu_custom_call.1} parent=11 // pred_check_branch
          %186 = sbr.rel (%p184) target = $region20
        $region19: #{tpu_custom_call.1} parent=11 // pred_region
          %188 = vsyncadd [#allocation6], 0
          %s190 = sshll.u32 %s2, 4
          %s191 = int_to_ptr.hbm [resolvable:$true] %s190
          %s192 = sshll.u32 [#allocation7], 4
          %s193 = int_to_ptr.vmem [resolvable:$true] %s192
          %195 = dma.hbm_to_vmem [thread:$0]  %s191, 32, %s193, [#allocation6]
        $region20: #{tpu_custom_call.1} parent=11 // pred_fallthru
          _
        // Predicated region
        $region21: #{tpu_custom_call.1} parent=11 // pred_check
          %p196 = pneg %p108
        $region22: #{tpu_custom_call.1} parent=11 // pred_check_branch
          %198 = sbr.rel (%p196) target = $region24
        $region23: #{tpu_custom_call.1} parent=11 // pred_region
          %200 = vsyncadd [#allocation9], 0
          %s201 = sshll.u32 %s3, 4
          %s202 = int_to_ptr.hbm [resolvable:$true] %s201
          %s203 = sshll.u32 [#allocation8], 4
          %s204 = int_to_ptr.vmem [resolvable:$true] %s203
          %209 = dma.hbm_to_vmem [thread:$0]  %s202, 4096, %s204, [#allocation9], 128, 128, 8
        $region24: #{tpu_custom_call.1} parent=11 // pred_fallthru
          _
        // Predicated region
        $region25: #{tpu_custom_call.1} parent=11 // pred_check
          %p210 = pneg %p129
        $region26: #{tpu_custom_call.1} parent=11 // pred_check_branch
          %212 = sbr.rel (%p210) target = $region28
        $region27: #{tpu_custom_call.1} parent=11 // pred_region
          _
        $region28: #{tpu_custom_call.1} parent=11 // pred_fallthru
          _
      $region12: #{tpu_custom_call.1} parent=5 // pred_fallthru
        _
      %p213 = scmp.lt.s32.totalorder %s19, 2
      // Predicated region
      $region29: #{tpu_custom_call.1} parent=5 // pred_check
        %p214 = pneg %p213
      $region30: #{tpu_custom_call.1} parent=5 // pred_check_branch
        %216 = sbr.rel (%p214) target = $region32
      $region31: #{tpu_custom_call.1} parent=5 // pred_region
        // Predicated region
        $region33: #{tpu_custom_call.1} parent=31 // pred_check
          %p217 = pneg %p39
        $region34: #{tpu_custom_call.1} parent=31 // pred_check_branch
          %219 = sbr.rel (%p217) target = $region36
        $region35: #{tpu_custom_call.1} parent=31 // pred_region
          %s220 = sand.u32 %s29, 1
          %s221 = scalar_lea.sflag [#allocation3], %s220
          %s222 = sand.u32 %s29, 1
          %s223 = smul.addr %s222, 128
          %s224 = scalar_lea.vmem [#allocation2], %s223
          %s225 = smul.u32 16, %s19
          %227 = vsyncadd %s221, 0
          %s228 = smul.addr %s225, 8
          %s229 = scalar_lea.hbm %s0, %s228
          %s230 = sshll.u32 %s229, 4
          %s231 = int_to_ptr.hbm [resolvable:$true] %s230
          %s232 = sshll.u32 %s224, 4
          %s233 = int_to_ptr.vmem [resolvable:$true] %s232
          %238 = dma.hbm_to_vmem [thread:$0]  %s231, 2048, %s233, %s221, 128, 128, 8
        $region36: #{tpu_custom_call.1} parent=31 // pred_fallthru
          _
      $region32: #{tpu_custom_call.1} parent=5 // pred_fallthru
        _
      %p239 = scmp.le.s32.totalorder 1, %s19
      %p240 = scmp.lt.s32.totalorder %s19, 3
      %p241 = pnand %p239, %p240
      %p242 = pneg %p241
      // Predicated region
      $region37: #{tpu_custom_call.1} parent=5 // pred_check
        _
      $region38: #{tpu_custom_call.1} parent=5 // pred_check_branch
        %244 = sbr.rel (%p241) target = $region40
      $region39: #{tpu_custom_call.1} parent=5 // pred_region
        %s245 = ssub.s32 %s19, 1
        %s246 = sand.u32 %s32, 1
        %s247 = scalar_lea.sflag [#allocation3], %s246
        %s248 = sand.u32 %s32, 1
        %s249 = smul.addr %s248, 128
        %s250 = scalar_lea.vmem [#allocation2], %s249
        // Predicated region
        $region41: #{tpu_custom_call.1} parent=39 // pred_check
          %p251 = pneg %p45
        $region42: #{tpu_custom_call.1} parent=39 // pred_check_branch
          %253 = sbr.rel (%p251) target = $region44
        $region43: #{tpu_custom_call.1} parent=39 // pred_region
          %255 = dma.done %s247, 2048
        $region44: #{tpu_custom_call.1} parent=39 // pred_fallthru
          _
        // Predicated region
        $region45: #{tpu_custom_call.1} parent=39 // pred_check
          %p256 = pneg %p66
        $region46: #{tpu_custom_call.1} parent=39 // pred_check_branch
          %258 = sbr.rel (%p256) target = $region48
        $region47: #{tpu_custom_call.1} parent=39 // pred_region
          %260 = dma.done [#allocation6], 4096
        $region48: #{tpu_custom_call.1} parent=39 // pred_fallthru
          _
        // Predicated region
        $region49: #{tpu_custom_call.1} parent=39 // pred_check
          %p261 = pneg %p87
        $region50: #{tpu_custom_call.1} parent=39 // pred_check_branch
          %263 = sbr.rel (%p261) target = $region52
        $region51: #{tpu_custom_call.1} parent=39 // pred_region
          %265 = dma.done [#allocation6], 32
        $region52: #{tpu_custom_call.1} parent=39 // pred_fallthru
          _
        // Predicated region
        $region53: #{tpu_custom_call.1} parent=39 // pred_check
          %p266 = pneg %p108
        $region54: #{tpu_custom_call.1} parent=39 // pred_check_branch
          %268 = sbr.rel (%p266) target = $region56
        $region55: #{tpu_custom_call.1} parent=39 // pred_region
          %270 = dma.done [#allocation9], 4096
        $region56: #{tpu_custom_call.1} parent=39 // pred_fallthru
          _
        %s271 = sand.u32 %s32, 1
        %s272 = scalar_lea.sflag [#allocation3], %s271
        %s273 = sand.u32 %s32, 1
        %s274 = smul.addr %s273, 128
        %s275 = scalar_lea.vmem [#allocation2], %s274
        %p276 = pneg %p45
        %p277 = pneg %p42
        %p278 = pneg %p66
        %p279 = pneg %p63
        %p280 = pneg %p87
        %p281 = pneg %p84
        %p282 = pneg %p108
        %p283 = pneg %p105
        %p284 = pneg %p129
        %p285 = pneg %p126
        %p286 = pneg %p155
        %p287 = pneg %p152
        %s288 = sand.u32 %s142, 1
        %s289 = scalar_lea.sflag [#allocation4], %s288
        %s290 = sand.u32 %s142, 1
        %s291 = smul.addr %s290, 128
        %s292 = scalar_lea.vmem [#allocation10], %s291
        %s293 = smul.u32 16, %s24
        %s294 = smul.u32 16, %s24
        %v295 = vld [vmem:[%s250] sm:$0xff]
        %v296 = vld [vmem:[%s250 + $0x8] sm:$0xff]
        %v297 = vld [vmem:[%s250 + $0x10] sm:$0xff]
        %v298 = vld [vmem:[%s250 + $0x18] sm:$0xff]
        %v299 = vld [vmem:[%s250 + $0x20] sm:$0xff]
        %v300 = vld [vmem:[%s250 + $0x28] sm:$0xff]
        %v301 = vld [vmem:[%s250 + $0x30] sm:$0xff]
        %v302 = vld [vmem:[%s250 + $0x38] sm:$0xff]
        %v303 = vld [vmem:[%s250 + $0x40] sm:$0xff]
        %v304 = vld [vmem:[%s250 + $0x48] sm:$0xff]
        %v305 = vld [vmem:[%s250 + $0x50] sm:$0xff]
        %v306 = vld [vmem:[%s250 + $0x58] sm:$0xff]
        %v307 = vld [vmem:[%s250 + $0x60] sm:$0xff]
        %v308 = vld [vmem:[%s250 + $0x68] sm:$0xff]
        %v309 = vld [vmem:[%s250 + $0x70] sm:$0xff]
        %v310 = vld [vmem:[%s250 + $0x78] sm:$0xff]
        %v311 = vld [vmem:[#allocation5] sm:$0xff]
        %v312 = vld [vmem:[#allocation5 + $0x8] sm:$0xff]
        %v313 = vld [vmem:[#allocation5 + $0x10] sm:$0xff]
        %v314 = vld [vmem:[#allocation5 + $0x18] sm:$0xff]
        %v315 = vld [vmem:[#allocation5 + $0x20] sm:$0xff]
        %v316 = vld [vmem:[#allocation5 + $0x28] sm:$0xff]
        %v317 = vld [vmem:[#allocation5 + $0x30] sm:$0xff]
        %v318 = vld [vmem:[#allocation5 + $0x38] sm:$0xff]
        %v319 = vld [vmem:[#allocation5 + $0x40] sm:$0xff]
        %v320 = vld [vmem:[#allocation5 + $0x48] sm:$0xff]
        %v321 = vld [vmem:[#allocation5 + $0x50] sm:$0xff]
        %v322 = vld [vmem:[#allocation5 + $0x58] sm:$0xff]
        %v323 = vld [vmem:[#allocation5 + $0x60] sm:$0xff]
        %v324 = vld [vmem:[#allocation5 + $0x68] sm:$0xff]
        %v325 = vld [vmem:[#allocation5 + $0x70] sm:$0xff]
        %v326 = vld [vmem:[#allocation5 + $0x78] sm:$0xff]
        %v327 = vld [vmem:[#allocation5 + $0x80] sm:$0xff]
        %v328 = vld [vmem:[#allocation5 + $0x88] sm:$0xff]
        %v329 = vld [vmem:[#allocation5 + $0x90] sm:$0xff]
        %v330 = vld [vmem:[#allocation5 + $0x98] sm:$0xff]
        %v331 = vld [vmem:[#allocation5 + $0xa0] sm:$0xff]
        %v332 = vld [vmem:[#allocation5 + $0xa8] sm:$0xff]
        %v333 = vld [vmem:[#allocation5 + $0xb0] sm:$0xff]
        %v334 = vld [vmem:[#allocation5 + $0xb8] sm:$0xff]
        %v335 = vld [vmem:[#allocation5 + $0xc0] sm:$0xff]
        %v336 = vld [vmem:[#allocation5 + $0xc8] sm:$0xff]
        %v337 = vld [vmem:[#allocation5 + $0xd0] sm:$0xff]
        %v338 = vld [vmem:[#allocation5 + $0xd8] sm:$0xff]
        %v339 = vld [vmem:[#allocation5 + $0xe0] sm:$0xff]
        %v340 = vld [vmem:[#allocation5 + $0xe8] sm:$0xff]
        %v341 = vld [vmem:[#allocation5 + $0xf0] sm:$0xff]
        %v342 = vld [vmem:[#allocation5 + $0xf8] sm:$0xff]
        %v343 = vld [vmem:[#allocation7] sm:$0x3]
        %v345 = vperm.slane %v343, 0
        %v346 = vperm.slane %v343, 1
        %349 = vmatpush.msra.mxu0 %v341
        %350 = vmatpush.msra.mxu0 %v339
        %351 = vmatpush.msra.mxu0 %v337
        %352 = vmatpush.msra.mxu0 %v335
        %353 = vmatpush.msra.mxu0 %v333
        %354 = vmatpush.msra.mxu0 %v331
        %355 = vmatpush.msra.mxu0 %v329
        %356 = vmatpush.msra.mxu0 %v327
        %357 = vmatpush.msra.mxu0 %v325
        %358 = vmatpush.msra.mxu0 %v323
        %359 = vmatpush.msra.mxu0 %v321
        %360 = vmatpush.msra.mxu0 %v319
        %361 = vmatpush.msra.mxu0 %v317
        %362 = vmatpush.msra.mxu0 %v315
        %363 = vmatpush.msra.mxu0 %v313
        %364 = vmatpush.msra.mxu0 %v311
        %365 = vmatmul.f32.gmra.mxu0 %v295
        %v366 = vpop.f32.mrf.mxu0
        %v367 = vadd.f32 %v345, %v366
        %368 = vmatmul.f32.gmra.mxu0 %v296
        %v369 = vpop.f32.mrf.mxu0
        %v370 = vadd.f32 %v345, %v369
        %371 = vmatmul.f32.gmra.mxu0 %v297
        %v372 = vpop.f32.mrf.mxu0
        %v373 = vadd.f32 %v345, %v372
        %374 = vmatmul.f32.gmra.mxu0 %v298
        %v375 = vpop.f32.mrf.mxu0
        %v376 = vadd.f32 %v345, %v375
        %377 = vmatmul.f32.gmra.mxu0 %v299
        %v378 = vpop.f32.mrf.mxu0
        %v379 = vadd.f32 %v345, %v378
        %380 = vmatmul.f32.gmra.mxu0 %v300
        %v381 = vpop.f32.mrf.mxu0
        %v382 = vadd.f32 %v345, %v381
        %383 = vmatmul.f32.gmra.mxu0 %v301
        %v384 = vpop.f32.mrf.mxu0
        %v385 = vadd.f32 %v345, %v384
        %386 = vmatmul.f32.gmra.mxu0 %v302
        %v387 = vpop.f32.mrf.mxu0
        %v388 = vadd.f32 %v345, %v387
        %389 = vmatmul.f32.gmra.mxu0 %v303
        %v390 = vpop.f32.mrf.mxu0
        %v391 = vadd.f32 %v345, %v390
        %392 = vmatmul.f32.gmra.mxu0 %v304
        %v393 = vpop.f32.mrf.mxu0
        %v394 = vadd.f32 %v345, %v393
        %395 = vmatmul.f32.gmra.mxu0 %v305
        %v396 = vpop.f32.mrf.mxu0
        %v397 = vadd.f32 %v345, %v396
        %398 = vmatmul.f32.gmra.mxu0 %v306
        %v399 = vpop.f32.mrf.mxu0
        %v400 = vadd.f32 %v345, %v399
        %401 = vmatmul.f32.gmra.mxu0 %v307
        %v402 = vpop.f32.mrf.mxu0
        %v403 = vadd.f32 %v345, %v402
        %404 = vmatmul.f32.gmra.mxu0 %v308
        %v405 = vpop.f32.mrf.mxu0
        %v406 = vadd.f32 %v345, %v405
        %407 = vmatmul.f32.gmra.mxu0 %v309
        %v408 = vpop.f32.mrf.mxu0
        %v409 = vadd.f32 %v345, %v408
        %410 = vmatmul.f32.gmra.mxu0 %v310
        %v411 = vpop.f32.mrf.mxu0
        %v412 = vadd.f32 %v345, %v411
        %413 = vdwg.mxu0
        %414 = vmatpush.msra.mxu0 %v342
        %415 = vmatpush.msra.mxu0 %v340
        %416 = vmatpush.msra.mxu0 %v338
        %417 = vmatpush.msra.mxu0 %v336
        %418 = vmatpush.msra.mxu0 %v334
        %419 = vmatpush.msra.mxu0 %v332
        %420 = vmatpush.msra.mxu0 %v330
        %421 = vmatpush.msra.mxu0 %v328
        %422 = vmatpush.msra.mxu0 %v326
        %423 = vmatpush.msra.mxu0 %v324
        %424 = vmatpush.msra.mxu0 %v322
        %425 = vmatpush.msra.mxu0 %v320
        %426 = vmatpush.msra.mxu0 %v318
        %427 = vmatpush.msra.mxu0 %v316
        %428 = vmatpush.msra.mxu0 %v314
        %429 = vmatpush.msra.mxu0 %v312
        %430 = vmatmul.f32.gmra.mxu0 %v295
        %v431 = vpop.f32.mrf.mxu0
        %v432 = vadd.f32 %v346, %v431
        %433 = vmatmul.f32.gmra.mxu0 %v296
        %v434 = vpop.f32.mrf.mxu0
        %v435 = vadd.f32 %v346, %v434
        %436 = vmatmul.f32.gmra.mxu0 %v297
        %v437 = vpop.f32.mrf.mxu0
        %v438 = vadd.f32 %v346, %v437
        %439 = vmatmul.f32.gmra.mxu0 %v298
        %v440 = vpop.f32.mrf.mxu0
        %v441 = vadd.f32 %v346, %v440
        %442 = vmatmul.f32.gmra.mxu0 %v299
        %v443 = vpop.f32.mrf.mxu0
        %v444 = vadd.f32 %v346, %v443
        %445 = vmatmul.f32.gmra.mxu0 %v300
        %v446 = vpop.f32.mrf.mxu0
        %v447 = vadd.f32 %v346, %v446
        %448 = vmatmul.f32.gmra.mxu0 %v301
        %v449 = vpop.f32.mrf.mxu0
        %v450 = vadd.f32 %v346, %v449
        %451 = vmatmul.f32.gmra.mxu0 %v302
        %v452 = vpop.f32.mrf.mxu0
        %v453 = vadd.f32 %v346, %v452
        %454 = vmatmul.f32.gmra.mxu0 %v303
        %v455 = vpop.f32.mrf.mxu0
        %v456 = vadd.f32 %v346, %v455
        %457 = vmatmul.f32.gmra.mxu0 %v304
        %v458 = vpop.f32.mrf.mxu0
        %v459 = vadd.f32 %v346, %v458
        %460 = vmatmul.f32.gmra.mxu0 %v305
        %v461 = vpop.f32.mrf.mxu0
        %v462 = vadd.f32 %v346, %v461
        %463 = vmatmul.f32.gmra.mxu0 %v306
        %v464 = vpop.f32.mrf.mxu0
        %v465 = vadd.f32 %v346, %v464
        %466 = vmatmul.f32.gmra.mxu0 %v307
        %v467 = vpop.f32.mrf.mxu0
        %v468 = vadd.f32 %v346, %v467
        %469 = vmatmul.f32.gmra.mxu0 %v308
        %v470 = vpop.f32.mrf.mxu0
        %v471 = vadd.f32 %v346, %v470
        %472 = vmatmul.f32.gmra.mxu0 %v309
        %v473 = vpop.f32.mrf.mxu0
        %v474 = vadd.f32 %v346, %v473
        %475 = vmatmul.f32.gmra.mxu0 %v310
        %v476 = vpop.f32.mrf.mxu0
        %v477 = vadd.f32 %v346, %v476
        %478 = vdwg.mxu0
        %v479 = vmul.f32 %v367, %v367
        %v480 = vmul.f32 %v432, %v432
        %v481 = vmul.f32 %v370, %v370
        %v482 = vmul.f32 %v435, %v435
        %v483 = vmul.f32 %v373, %v373
        %v484 = vmul.f32 %v438, %v438
        %v485 = vmul.f32 %v376, %v376
        %v486 = vmul.f32 %v441, %v441
        %v487 = vmul.f32 %v379, %v379
        %v488 = vmul.f32 %v444, %v444
        %v489 = vmul.f32 %v382, %v382
        %v490 = vmul.f32 %v447, %v447
        %v491 = vmul.f32 %v385, %v385
        %v492 = vmul.f32 %v450, %v450
        %v493 = vmul.f32 %v388, %v388
        %v494 = vmul.f32 %v453, %v453
        %v495 = vmul.f32 %v391, %v391
        %v496 = vmul.f32 %v456, %v456
        %v497 = vmul.f32 %v394, %v394
        %v498 = vmul.f32 %v459, %v459
        %v499 = vmul.f32 %v397, %v397
        %v500 = vmul.f32 %v462, %v462
        %v501 = vmul.f32 %v400, %v400
        %v502 = vmul.f32 %v465, %v465
        %v503 = vmul.f32 %v403, %v403
        %v504 = vmul.f32 %v468, %v468
        %v505 = vmul.f32 %v406, %v406
        %v506 = vmul.f32 %v471, %v471
        %v507 = vmul.f32 %v409, %v409
        %v508 = vmul.f32 %v474, %v474
        %v509 = vmul.f32 %v412, %v412
        %v510 = vmul.f32 %v477, %v477
        %v511 = vmul.f32 %v367, %v479
        %v512 = vmul.f32 %v432, %v480
        %v513 = vmul.f32 %v370, %v481
        %v514 = vmul.f32 %v435, %v482
        %v515 = vmul.f32 %v373, %v483
        %v516 = vmul.f32 %v438, %v484
        %v517 = vmul.f32 %v376, %v485
        %v518 = vmul.f32 %v441, %v486
        %v519 = vmul.f32 %v379, %v487
        %v520 = vmul.f32 %v444, %v488
        %v521 = vmul.f32 %v382, %v489
        %v522 = vmul.f32 %v447, %v490
        %v523 = vmul.f32 %v385, %v491
        %v524 = vmul.f32 %v450, %v492
        %v525 = vmul.f32 %v388, %v493
        %v526 = vmul.f32 %v453, %v494
        %v527 = vmul.f32 %v391, %v495
        %v528 = vmul.f32 %v456, %v496
        %v529 = vmul.f32 %v394, %v497
        %v530 = vmul.f32 %v459, %v498
        %v531 = vmul.f32 %v397, %v499
        %v532 = vmul.f32 %v462, %v500
        %v533 = vmul.f32 %v400, %v501
        %v534 = vmul.f32 %v465, %v502
        %v535 = vmul.f32 %v403, %v503
        %v536 = vmul.f32 %v468, %v504
        %v537 = vmul.f32 %v406, %v505
        %v538 = vmul.f32 %v471, %v506
        %v539 = vmul.f32 %v409, %v507
        %v540 = vmul.f32 %v474, %v508
        %v541 = vmul.f32 %v412, %v509
        %v542 = vmul.f32 %v477, %v510
        %v543 = vmul.f32 %v511, 0.044715
        %v544 = vmul.f32 %v512, 0.044715
        %v545 = vmul.f32 %v513, 0.044715
        %v546 = vmul.f32 %v514, 0.044715
        %v547 = vmul.f32 %v515, 0.044715
        %v548 = vmul.f32 %v516, 0.044715
        %v549 = vmul.f32 %v517, 0.044715
        %v550 = vmul.f32 %v518, 0.044715
        %v551 = vmul.f32 %v519, 0.044715
        %v552 = vmul.f32 %v520, 0.044715
        %v553 = vmul.f32 %v521, 0.044715
        %v554 = vmul.f32 %v522, 0.044715
        %v555 = vmul.f32 %v523, 0.044715
        %v556 = vmul.f32 %v524, 0.044715
        %v557 = vmul.f32 %v525, 0.044715
        %v558 = vmul.f32 %v526, 0.044715
        %v559 = vmul.f32 %v527, 0.044715
        %v560 = vmul.f32 %v528, 0.044715
        %v561 = vmul.f32 %v529, 0.044715
        %v562 = vmul.f32 %v530, 0.044715
        %v563 = vmul.f32 %v531, 0.044715
        %v564 = vmul.f32 %v532, 0.044715
        %v565 = vmul.f32 %v533, 0.044715
        %v566 = vmul.f32 %v534, 0.044715
        %v567 = vmul.f32 %v535, 0.044715
        %v568 = vmul.f32 %v536, 0.044715
        %v569 = vmul.f32 %v537, 0.044715
        %v570 = vmul.f32 %v538, 0.044715
        %v571 = vmul.f32 %v539, 0.044715
        %v572 = vmul.f32 %v540, 0.044715
        %v573 = vmul.f32 %v541, 0.044715
        %v574 = vmul.f32 %v542, 0.044715
        %v575 = vadd.f32 %v367, %v543
        %v576 = vadd.f32 %v432, %v544
        %v577 = vadd.f32 %v370, %v545
        %v578 = vadd.f32 %v435, %v546
        %v579 = vadd.f32 %v373, %v547
        %v580 = vadd.f32 %v438, %v548
        %v581 = vadd.f32 %v376, %v549
        %v582 = vadd.f32 %v441, %v550
        %v583 = vadd.f32 %v379, %v551
        %v584 = vadd.f32 %v444, %v552
        %v585 = vadd.f32 %v382, %v553
        %v586 = vadd.f32 %v447, %v554
        %v587 = vadd.f32 %v385, %v555
        %v588 = vadd.f32 %v450, %v556
        %v589 = vadd.f32 %v388, %v557
        %v590 = vadd.f32 %v453, %v558
        %v591 = vadd.f32 %v391, %v559
        %v592 = vadd.f32 %v456, %v560
        %v593 = vadd.f32 %v394, %v561
        %v594 = vadd.f32 %v459, %v562
        %v595 = vadd.f32 %v397, %v563
        %v596 = vadd.f32 %v462, %v564
        %v597 = vadd.f32 %v400, %v565
        %v598 = vadd.f32 %v465, %v566
        %v599 = vadd.f32 %v403, %v567
        %v600 = vadd.f32 %v468, %v568
        %v601 = vadd.f32 %v406, %v569
        %v602 = vadd.f32 %v471, %v570
        %v603 = vadd.f32 %v409, %v571
        %v604 = vadd.f32 %v474, %v572
        %v605 = vadd.f32 %v412, %v573
        %v606 = vadd.f32 %v477, %v574
        %v607 = vmul.f32 %v575, 0.7978846
        %v608 = vmul.f32 %v576, 0.7978846
        %v609 = vmul.f32 %v577, 0.7978846
        %v610 = vmul.f32 %v578, 0.7978846
        %v611 = vmul.f32 %v579, 0.7978846
        %v612 = vmul.f32 %v580, 0.7978846
        %v613 = vmul.f32 %v581, 0.7978846
        %v614 = vmul.f32 %v582, 0.7978846
        %v615 = vmul.f32 %v583, 0.7978846
        %v616 = vmul.f32 %v584, 0.7978846
        %v617 = vmul.f32 %v585, 0.7978846
        %v618 = vmul.f32 %v586, 0.7978846
        %v619 = vmul.f32 %v587, 0.7978846
        %v620 = vmul.f32 %v588, 0.7978846
        %v621 = vmul.f32 %v589, 0.7978846
        %v622 = vmul.f32 %v590, 0.7978846
        %v623 = vmul.f32 %v591, 0.7978846
        %v624 = vmul.f32 %v592, 0.7978846
        %v625 = vmul.f32 %v593, 0.7978846
        %v626 = vmul.f32 %v594, 0.7978846
        %v627 = vmul.f32 %v595, 0.7978846
        %v628 = vmul.f32 %v596, 0.7978846
        %v629 = vmul.f32 %v597, 0.7978846
        %v630 = vmul.f32 %v598, 0.7978846
        %v631 = vmul.f32 %v599, 0.7978846
        %v632 = vmul.f32 %v600, 0.7978846
        %v633 = vmul.f32 %v601, 0.7978846
        %v634 = vmul.f32 %v602, 0.7978846
        %v635 = vmul.f32 %v603, 0.7978846
        %v636 = vmul.f32 %v604, 0.7978846
        %v637 = vmul.f32 %v605, 0.7978846
        %v638 = vmul.f32 %v606, 0.7978846
        %v639 = vtanh.pop %v607
        %v640 = vtanh.pop %v608
        %v641 = vtanh.pop %v609
        %v642 = vtanh.pop %v610
        %v643 = vtanh.pop %v611
        %v644 = vtanh.pop %v612
        %v645 = vtanh.pop %v613
        %v646 = vtanh.pop %v614
        %v647 = vtanh.pop %v615
        %v648 = vtanh.pop %v616
        %v649 = vtanh.pop %v617
        %v650 = vtanh.pop %v618
        %v651 = vtanh.pop %v619
        %v652 = vtanh.pop %v620
        %v653 = vtanh.pop %v621
        %v654 = vtanh.pop %v622
        %v655 = vtanh.pop %v623
        %v656 = vtanh.pop %v624
        %v657 = vtanh.pop %v625
        %v658 = vtanh.pop %v626
        %v659 = vtanh.pop %v627
        %v660 = vtanh.pop %v628
        %v661 = vtanh.pop %v629
        %v662 = vtanh.pop %v630
        %v663 = vtanh.pop %v631
        %v664 = vtanh.pop %v632
        %v665 = vtanh.pop %v633
        %v666 = vtanh.pop %v634
        %v667 = vtanh.pop %v635
        %v668 = vtanh.pop %v636
        %v669 = vtanh.pop %v637
        %v670 = vtanh.pop %v638
        %v671 = vadd.f32 %v639, 1.0
        %v672 = vadd.f32 %v640, 1.0
        %v673 = vadd.f32 %v641, 1.0
        %v674 = vadd.f32 %v642, 1.0
        %v675 = vadd.f32 %v643, 1.0
        %v676 = vadd.f32 %v644, 1.0
        %v677 = vadd.f32 %v645, 1.0
        %v678 = vadd.f32 %v646, 1.0
        %v679 = vadd.f32 %v647, 1.0
        %v680 = vadd.f32 %v648, 1.0
        %v681 = vadd.f32 %v649, 1.0
        %v682 = vadd.f32 %v650, 1.0
        %v683 = vadd.f32 %v651, 1.0
        %v684 = vadd.f32 %v652, 1.0
        %v685 = vadd.f32 %v653, 1.0
        %v686 = vadd.f32 %v654, 1.0
        %v687 = vadd.f32 %v655, 1.0
        %v688 = vadd.f32 %v656, 1.0
        %v689 = vadd.f32 %v657, 1.0
        %v690 = vadd.f32 %v658, 1.0
        %v691 = vadd.f32 %v659, 1.0
        %v692 = vadd.f32 %v660, 1.0
        %v693 = vadd.f32 %v661, 1.0
        %v694 = vadd.f32 %v662, 1.0
        %v695 = vadd.f32 %v663, 1.0
        %v696 = vadd.f32 %v664, 1.0
        %v697 = vadd.f32 %v665, 1.0
        %v698 = vadd.f32 %v666, 1.0
        %v699 = vadd.f32 %v667, 1.0
        %v700 = vadd.f32 %v668, 1.0
        %v701 = vadd.f32 %v669, 1.0
        %v702 = vadd.f32 %v670, 1.0
        %v703 = vmul.f32 %v671, 0.5
        %v704 = vmul.f32 %v672, 0.5
        %v705 = vmul.f32 %v673, 0.5
        %v706 = vmul.f32 %v674, 0.5
        %v707 = vmul.f32 %v675, 0.5
        %v708 = vmul.f32 %v676, 0.5
        %v709 = vmul.f32 %v677, 0.5
        %v710 = vmul.f32 %v678, 0.5
        %v711 = vmul.f32 %v679, 0.5
        %v712 = vmul.f32 %v680, 0.5
        %v713 = vmul.f32 %v681, 0.5
        %v714 = vmul.f32 %v682, 0.5
        %v715 = vmul.f32 %v683, 0.5
        %v716 = vmul.f32 %v684, 0.5
        %v717 = vmul.f32 %v685, 0.5
        %v718 = vmul.f32 %v686, 0.5
        %v719 = vmul.f32 %v687, 0.5
        %v720 = vmul.f32 %v688, 0.5
        %v721 = vmul.f32 %v689, 0.5
        %v722 = vmul.f32 %v690, 0.5
        %v723 = vmul.f32 %v691, 0.5
        %v724 = vmul.f32 %v692, 0.5
        %v725 = vmul.f32 %v693, 0.5
        %v726 = vmul.f32 %v694, 0.5
        %v727 = vmul.f32 %v695, 0.5
        %v728 = vmul.f32 %v696, 0.5
        %v729 = vmul.f32 %v697, 0.5
        %v730 = vmul.f32 %v698, 0.5
        %v731 = vmul.f32 %v699, 0.5
        %v732 = vmul.f32 %v700, 0.5
        %v733 = vmul.f32 %v701, 0.5
        %v734 = vmul.f32 %v702, 0.5
        %v735 = vmul.f32 %v367, %v703
        %v736 = vmul.f32 %v432, %v704
        %v737 = vmul.f32 %v370, %v705
        %v738 = vmul.f32 %v435, %v706
        %v739 = vmul.f32 %v373, %v707
        %v740 = vmul.f32 %v438, %v708
        %v741 = vmul.f32 %v376, %v709
        %v742 = vmul.f32 %v441, %v710
        %v743 = vmul.f32 %v379, %v711
        %v744 = vmul.f32 %v444, %v712
        %v745 = vmul.f32 %v382, %v713
        %v746 = vmul.f32 %v447, %v714
        %v747 = vmul.f32 %v385, %v715
        %v748 = vmul.f32 %v450, %v716
        %v749 = vmul.f32 %v388, %v717
        %v750 = vmul.f32 %v453, %v718
        %v751 = vmul.f32 %v391, %v719
        %v752 = vmul.f32 %v456, %v720
        %v753 = vmul.f32 %v394, %v721
        %v754 = vmul.f32 %v459, %v722
        %v755 = vmul.f32 %v397, %v723
        %v756 = vmul.f32 %v462, %v724
        %v757 = vmul.f32 %v400, %v725
        %v758 = vmul.f32 %v465, %v726
        %v759 = vmul.f32 %v403, %v727
        %v760 = vmul.f32 %v468, %v728
        %v761 = vmul.f32 %v406, %v729
        %v762 = vmul.f32 %v471, %v730
        %v763 = vmul.f32 %v409, %v731
        %v764 = vmul.f32 %v474, %v732
        %v765 = vmul.f32 %v412, %v733
        %v766 = vmul.f32 %v477, %v734
        %v767 = vld [vmem:[#allocation8] sm:$0xff]
        %v768 = vld [vmem:[#allocation8 + $0x8] sm:$0xff]
        %v769 = vld [vmem:[#allocation8 + $0x10] sm:$0xff]
        %v770 = vld [vmem:[#allocation8 + $0x18] sm:$0xff]
        %v771 = vld [vmem:[#allocation8 + $0x20] sm:$0xff]
        %v772 = vld [vmem:[#allocation8 + $0x28] sm:$0xff]
        %v773 = vld [vmem:[#allocation8 + $0x30] sm:$0xff]
        %v774 = vld [vmem:[#allocation8 + $0x38] sm:$0xff]
        %v775 = vld [vmem:[#allocation8 + $0x40] sm:$0xff]
        %v776 = vld [vmem:[#allocation8 + $0x48] sm:$0xff]
        %v777 = vld [vmem:[#allocation8 + $0x50] sm:$0xff]
        %v778 = vld [vmem:[#allocation8 + $0x58] sm:$0xff]
        %v779 = vld [vmem:[#allocation8 + $0x60] sm:$0xff]
        %v780 = vld [vmem:[#allocation8 + $0x68] sm:$0xff]
        %v781 = vld [vmem:[#allocation8 + $0x70] sm:$0xff]
        %v782 = vld [vmem:[#allocation8 + $0x78] sm:$0xff]
        %v783 = vld [vmem:[#allocation8 + $0x80] sm:$0xff]
        %v784 = vld [vmem:[#allocation8 + $0x88] sm:$0xff]
        %v785 = vld [vmem:[#allocation8 + $0x90] sm:$0xff]
        %v786 = vld [vmem:[#allocation8 + $0x98] sm:$0xff]
        %v787 = vld [vmem:[#allocation8 + $0xa0] sm:$0xff]
        %v788 = vld [vmem:[#allocation8 + $0xa8] sm:$0xff]
        %v789 = vld [vmem:[#allocation8 + $0xb0] sm:$0xff]
        %v790 = vld [vmem:[#allocation8 + $0xb8] sm:$0xff]
        %v791 = vld [vmem:[#allocation8 + $0xc0] sm:$0xff]
        %v792 = vld [vmem:[#allocation8 + $0xc8] sm:$0xff]
        %v793 = vld [vmem:[#allocation8 + $0xd0] sm:$0xff]
        %v794 = vld [vmem:[#allocation8 + $0xd8] sm:$0xff]
        %v795 = vld [vmem:[#allocation8 + $0xe0] sm:$0xff]
        %v796 = vld [vmem:[#allocation8 + $0xe8] sm:$0xff]
        %v797 = vld [vmem:[#allocation8 + $0xf0] sm:$0xff]
        %v798 = vld [vmem:[#allocation8 + $0xf8] sm:$0xff]
        %v799 = vld [vmem:[%s4] sm:$0x1]
        %v801 = vperm.slane %v799, 0
        %803 = vmatpush.msra.mxu0 %v782
        %804 = vmatpush.msra.mxu0 %v781
        %805 = vmatpush.msra.mxu0 %v780
        %806 = vmatpush.msra.mxu0 %v779
        %807 = vmatpush.msra.mxu0 %v778
        %808 = vmatpush.msra.mxu0 %v777
        %809 = vmatpush.msra.mxu0 %v776
        %810 = vmatpush.msra.mxu0 %v775
        %811 = vmatpush.msra.mxu0 %v774
        %812 = vmatpush.msra.mxu0 %v773
        %813 = vmatpush.msra.mxu0 %v772
        %814 = vmatpush.msra.mxu0 %v771
        %815 = vmatpush.msra.mxu0 %v770
        %816 = vmatpush.msra.mxu0 %v769
        %817 = vmatpush.msra.mxu0 %v768
        %818 = vmatpush.msra.mxu0 %v767
        %819 = vmatmul.f32.gmra.mxu0 %v735
        %v820 = vpop.f32.mrf.mxu0
        %v821 = vadd.f32 %v801, %v820
        %822 = vmatmul.f32.gmra.mxu0 %v737
        %v823 = vpop.f32.mrf.mxu0
        %v824 = vadd.f32 %v801, %v823
        %825 = vmatmul.f32.gmra.mxu0 %v739
        %v826 = vpop.f32.mrf.mxu0
        %v827 = vadd.f32 %v801, %v826
        %828 = vmatmul.f32.gmra.mxu0 %v741
        %v829 = vpop.f32.mrf.mxu0
        %v830 = vadd.f32 %v801, %v829
        %831 = vmatmul.f32.gmra.mxu0 %v743
        %v832 = vpop.f32.mrf.mxu0
        %v833 = vadd.f32 %v801, %v832
        %834 = vmatmul.f32.gmra.mxu0 %v745
        %v835 = vpop.f32.mrf.mxu0
        %v836 = vadd.f32 %v801, %v835
        %837 = vmatmul.f32.gmra.mxu0 %v747
        %v838 = vpop.f32.mrf.mxu0
        %v839 = vadd.f32 %v801, %v838
        %840 = vmatmul.f32.gmra.mxu0 %v749
        %v841 = vpop.f32.mrf.mxu0
        %v842 = vadd.f32 %v801, %v841
        %843 = vmatmul.f32.gmra.mxu0 %v751
        %v844 = vpop.f32.mrf.mxu0
        %v845 = vadd.f32 %v801, %v844
        %846 = vmatmul.f32.gmra.mxu0 %v753
        %v847 = vpop.f32.mrf.mxu0
        %v848 = vadd.f32 %v801, %v847
        %849 = vmatmul.f32.gmra.mxu0 %v755
        %v850 = vpop.f32.mrf.mxu0
        %v851 = vadd.f32 %v801, %v850
        %852 = vmatmul.f32.gmra.mxu0 %v757
        %v853 = vpop.f32.mrf.mxu0
        %v854 = vadd.f32 %v801, %v853
        %855 = vmatmul.f32.gmra.mxu0 %v759
        %v856 = vpop.f32.mrf.mxu0
        %v857 = vadd.f32 %v801, %v856
        %858 = vmatmul.f32.gmra.mxu0 %v761
        %v859 = vpop.f32.mrf.mxu0
        %v860 = vadd.f32 %v801, %v859
        %861 = vmatmul.f32.gmra.mxu0 %v763
        %v862 = vpop.f32.mrf.mxu0
        %v863 = vadd.f32 %v801, %v862
        %864 = vmatmul.f32.gmra.mxu0 %v765
        %v865 = vpop.f32.mrf.mxu0
        %v866 = vadd.f32 %v801, %v865
        %867 = vdwg.mxu0
        %868 = vmatpush.msra.mxu0 %v798
        %869 = vmatpush.msra.mxu0 %v797
        %870 = vmatpush.msra.mxu0 %v796
        %871 = vmatpush.msra.mxu0 %v795
        %872 = vmatpush.msra.mxu0 %v794
        %873 = vmatpush.msra.mxu0 %v793
        %874 = vmatpush.msra.mxu0 %v792
        %875 = vmatpush.msra.mxu0 %v791
        %876 = vmatpush.msra.mxu0 %v790
        %877 = vmatpush.msra.mxu0 %v789
        %878 = vmatpush.msra.mxu0 %v788
        %879 = vmatpush.msra.mxu0 %v787
        %880 = vmatpush.msra.mxu0 %v786
        %881 = vmatpush.msra.mxu0 %v785
        %882 = vmatpush.msra.mxu0 %v784
        %883 = vmatpush.msra.mxu0 %v783
        %884 = vmatmul.f32.gmra.mxu0 %v736
        %v885 = vpop.f32.mrf.mxu0
        %v886 = vadd.f32 %v821, %v885
        %887 = vmatmul.f32.gmra.mxu0 %v738
        %v888 = vpop.f32.mrf.mxu0
        %v889 = vadd.f32 %v824, %v888
        %890 = vmatmul.f32.gmra.mxu0 %v740
        %v891 = vpop.f32.mrf.mxu0
        %v892 = vadd.f32 %v827, %v891
        %893 = vmatmul.f32.gmra.mxu0 %v742
        %v894 = vpop.f32.mrf.mxu0
        %v895 = vadd.f32 %v830, %v894
        %896 = vmatmul.f32.gmra.mxu0 %v744
        %v897 = vpop.f32.mrf.mxu0
        %v898 = vadd.f32 %v833, %v897
        %899 = vmatmul.f32.gmra.mxu0 %v746
        %v900 = vpop.f32.mrf.mxu0
        %v901 = vadd.f32 %v836, %v900
        %902 = vmatmul.f32.gmra.mxu0 %v748
        %v903 = vpop.f32.mrf.mxu0
        %v904 = vadd.f32 %v839, %v903
        %905 = vmatmul.f32.gmra.mxu0 %v750
        %v906 = vpop.f32.mrf.mxu0
        %v907 = vadd.f32 %v842, %v906
        %908 = vmatmul.f32.gmra.mxu0 %v752
        %v909 = vpop.f32.mrf.mxu0
        %v910 = vadd.f32 %v845, %v909
        %911 = vmatmul.f32.gmra.mxu0 %v754
        %v912 = vpop.f32.mrf.mxu0
        %v913 = vadd.f32 %v848, %v912
        %914 = vmatmul.f32.gmra.mxu0 %v756
        %v915 = vpop.f32.mrf.mxu0
        %v916 = vadd.f32 %v851, %v915
        %917 = vmatmul.f32.gmra.mxu0 %v758
        %v918 = vpop.f32.mrf.mxu0
        %v919 = vadd.f32 %v854, %v918
        %920 = vmatmul.f32.gmra.mxu0 %v760
        %v921 = vpop.f32.mrf.mxu0
        %v922 = vadd.f32 %v857, %v921
        %923 = vmatmul.f32.gmra.mxu0 %v762
        %v924 = vpop.f32.mrf.mxu0
        %v925 = vadd.f32 %v860, %v924
        %926 = vmatmul.f32.gmra.mxu0 %v764
        %v927 = vpop.f32.mrf.mxu0
        %v928 = vadd.f32 %v863, %v927
        %929 = vmatmul.f32.gmra.mxu0 %v766
        %v930 = vpop.f32.mrf.mxu0
        %v931 = vadd.f32 %v866, %v930
        %932 = vdwg.mxu0
        %933 = vst [vmem:[%s292] sm:$0xff] %v886
        %934 = vst [vmem:[%s292 + $0x8] sm:$0xff] %v889
        %935 = vst [vmem:[%s292 + $0x10] sm:$0xff] %v892
        %936 = vst [vmem:[%s292 + $0x18] sm:$0xff] %v895
        %937 = vst [vmem:[%s292 + $0x20] sm:$0xff] %v898
        %938 = vst [vmem:[%s292 + $0x28] sm:$0xff] %v901
        %939 = vst [vmem:[%s292 + $0x30] sm:$0xff] %v904
        %940 = vst [vmem:[%s292 + $0x38] sm:$0xff] %v907
        %941 = vst [vmem:[%s292 + $0x40] sm:$0xff] %v910
        %942 = vst [vmem:[%s292 + $0x48] sm:$0xff] %v913
        %943 = vst [vmem:[%s292 + $0x50] sm:$0xff] %v916
        %944 = vst [vmem:[%s292 + $0x58] sm:$0xff] %v919
        %945 = vst [vmem:[%s292 + $0x60] sm:$0xff] %v922
        %946 = vst [vmem:[%s292 + $0x68] sm:$0xff] %v925
        %947 = vst [vmem:[%s292 + $0x70] sm:$0xff] %v928
        %948 = vst [vmem:[%s292 + $0x78] sm:$0xff] %v931
        %s949 = sand.u32 %s142, 1
        %s950 = scalar_lea.sflag [#allocation4], %s949
        %s951 = sand.u32 %s142, 1
        %s952 = smul.addr %s951, 128
        %s953 = scalar_lea.vmem [#allocation10], %s952
        // Predicated region
        $region57: #{tpu_custom_call.1} parent=39 // pred_check
          %p954 = pneg %p152
        $region58: #{tpu_custom_call.1} parent=39 // pred_check_branch
          %956 = sbr.rel (%p954) target = $region60
        $region59: #{tpu_custom_call.1} parent=39 // pred_region
          %s957 = smul.u32 16, %s24
          %959 = vsyncadd %s950, 0
          %s960 = smul.addr %s957, 8
          %s961 = scalar_lea.hbm %s5, %s960
          %s962 = sshll.u32 %s953, 4
          %s963 = int_to_ptr.vmem [resolvable:$true] %s962
          %s964 = sshll.u32 %s961, 4
          %s965 = int_to_ptr.hbm [resolvable:$true] %s964
          %970 = dma.vmem_to_hbm [thread:$0]  %s963, 2048, %s965, %s950, 128, 128, 8
        $region60: #{tpu_custom_call.1} parent=39 // pred_fallthru
          _
      $region40: #{tpu_custom_call.1} parent=5 // pred_fallthru
        _
      %p971 = scmp.le.s32.totalorder 2, %s19
      // Predicated region
      $region61: #{tpu_custom_call.1} parent=5 // pred_check
        %p972 = pneg %p971
      $region62: #{tpu_custom_call.1} parent=5 // pred_check_branch
        %974 = sbr.rel (%p972) target = $region64
      $region63: #{tpu_custom_call.1} parent=5 // pred_region
        %s975 = ssub.s32 %s19, 2
        // Predicated region
        $region65: #{tpu_custom_call.1} parent=63 // pred_check
          %p976 = pneg %p158
        $region66: #{tpu_custom_call.1} parent=63 // pred_check_branch
          %978 = sbr.rel (%p976) target = $region68
        $region67: #{tpu_custom_call.1} parent=63 // pred_region
          %s979 = sand.u32 %s143, 1
          %s980 = scalar_lea.sflag [#allocation4], %s979
          %s981 = sand.u32 %s143, 1
          %s982 = smul.addr %s981, 128
          %s983 = scalar_lea.vmem [#allocation10], %s982
          %985 = dma.done %s980, 2048
        $region68: #{tpu_custom_call.1} parent=63 // pred_fallthru
          _
      $region64: #{tpu_custom_call.1} parent=5 // pred_fallthru
        _
    $region6: #{tpu_custom_call.1} parent=1 // loop_footer
      %s23 = sadd.s32 1, %s19
    $region7: #{tpu_custom_call.1} parent=1 // loop_footer_branch
      %18 = sbr.rel target = $region3
    $region8: #{tpu_custom_call.1} parent=1 // loop_exit
      _
    %986 = vsyncpa [#allocation3], 1
    %s987 = scalar_lea.sflag [#allocation3], 1
    %988 = vsyncpa %s987, 1
    %989 = vsyncpa [#allocation6], 1
    %990 = vsyncpa [#allocation9], 1
    %991 = vsyncpa [#allocation4], 1
    %s992 = scalar_lea.sflag [#allocation4], 1
    %993 = vsyncpa %s992, 1

</llo_original>
